<compile_context>
chip_gen: v7x
topology: tpu7x:2x2x1
jax: 0.10.0
libtpu: 0.0.40
codegen_flags: <defaults>
</compile_context>

<pallas_src>
import functools

import jax
import jax.numpy as jnp
from jax.experimental import pallas as pl
from jax.experimental.pallas import tpu as pltpu


def _vmem_capacity_bytes(default_bytes=64 * 1024 * 1024):
    """Best-effort per-generation VMEM capacity; conservative 64 MiB fallback."""
    try:
        info = pltpu.get_tpu_info()
        for name in ("vmem_capacity_bytes", "vmem_size_bytes", "vmem_bytes"):
            cap = getattr(info, name, None)
            if cap:
                return int(cap)
    except Exception:
        pass
    return default_bytes


def _channel_attention_kernel(x_ref, w1t_ref, w2t_ref, o_ref,
                              sum_ref, max_ref,
                              *, s_total, tile_s, inv_s):
    # x_ref:   (Bt, C, Ts)  streamed spatial tile (f32 or bf16)
    # w1t_ref: (C, Ch)      fc1 weight, transposed, resident in VMEM
    # w2t_ref: (Ch, C)      fc2 weight, transposed, resident in VMEM
    # o_ref:   (Bt, C)      sigmoid(channel attention), written on last S step
    # sum_ref/max_ref: (Bt, C) f32 running accumulators (VMEM scratch)
    s_idx = pl.program_id(1)
    n_s = pl.num_programs(1)

    @pl.when(s_idx == 0)
    def _init():
        sum_ref[...] = jnp.zeros(sum_ref.shape, sum_ref.dtype)
        max_ref[...] = jnp.full(max_ref.shape, -jnp.inf, max_ref.dtype)

    x = x_ref[...]
    if x.dtype != jnp.float32:
        # bf16 streaming: DMA saving already realized; accumulate in f32.
        x = x.astype(jnp.float32)

    def _accumulate(x_sum, x_max):
        # Hot path: VPU add/compare + one cross-lane XLU reduce per tile.
        sum_ref[...] += jnp.sum(x_sum, axis=-1)
        max_ref[...] = jnp.maximum(max_ref[...], jnp.max(x_max, axis=-1))

    if s_total % tile_s != 0:
        # Only the final S tile straddles the array end.  Keep the interior
        # path mask-free; pay the iota/compare/select cost only on that tile.
        @pl.when(s_idx != n_s - 1)
        def _interior():
            _accumulate(x, x)

        @pl.when(s_idx == n_s - 1)
        def _edge():
            # (1, 1, Ts) iota, broadcast compare (no tile-sized int32 temp).
            lane = jax.lax.broadcasted_iota(jnp.int32, (1, 1, tile_s), 2)
            valid = (s_idx * tile_s + lane) < s_total
            _accumulate(jnp.where(valid, x, 0.0),
                        jnp.where(valid, x, -jnp.inf))
    else:
        _accumulate(x, x)

    @pl.when(s_idx == n_s - 1)
    def _finalize():
        bt = o_ref.shape[0]
        avg_pool = sum_ref[...] * inv_s          # divide once, per output tile
        max_pool = max_ref[...]
        # Fused MLP over both pooled vectors: one push through the MXU pair.
        # TODO(synk): for a v7x split-S layout this MLP would move into a tiny
        # second pallas_call over all B at once; single-pass fusion kept here.
        pooled = jnp.concatenate([avg_pool, max_pool], axis=0)    # (2*Bt, C)
        h = jnp.dot(pooled, w1t_ref[...], preferred_element_type=jnp.float32)
        h = jnp.maximum(h, 0.0)                                   # ReLU
        y = jnp.dot(h, w2t_ref[...], preferred_element_type=jnp.float32)
        out = y[:bt] + y[bt:]
        o_ref[...] = jax.nn.sigmoid(out).astype(o_ref.dtype)


def channel_attention(x, w1, w2, *, tile_s=None,
                      s_tile_target_bytes=8 * 1024 * 1024,
                      x_buffer_count=2):
    """x: (B, C, H, W) f32/bf16; w1: (C//16, C); w2: (C, C//16) (1x1 convs squeezed)."""
    B, C, H, W = x.shape
    Ch = w1.shape[0]
    S = H * W

    x3 = x.reshape(B, C, S)
    w1t = jnp.transpose(w1).astype(jnp.float32)   # (C, Ch)
    w2t = jnp.transpose(w2).astype(jnp.float32)   # (Ch, C)

    elt = jnp.dtype(x.dtype).itemsize
    vmem_cap = _vmem_capacity_bytes()
    nbuf = max(2, int(x_buffer_count))

    # ---- Batch tile --------------------------------------------------------
    # Output block (Bt, C): second-to-last dim must be a multiple of 8 or the
    # full batch.  Prefer >=2 grid points on the parallel B axis so both v7x
    # TensorCores (and megacore on other gens) get work.
    if B % 8 == 0:
        b_tile = 8 if B >= 16 else B
    else:
        b_tile = B
    # TODO(synk): for B <= 8 on v7x a split-S layout (per-core partial
    # sum/max + combine pass) is needed to occupy both TCs; single core here.

    # ---- Spatial tile ------------------------------------------------------
    # Multiple of 128 lanes (or full extent when S <= 128).  Budgeted to
    # ~s_tile_target_bytes per block, floored at 512 lanes per (b,c) row for
    # strided-DMA efficiency, and capped so nbuf-deep buffering fits VMEM.
    if tile_s is None:
        if S <= 128:
            tile_s = S
        else:
            s_full = (S // 128) * 128
            budget_lanes = (s_tile_target_bytes // (b_tile * C * elt)) // 128 * 128
            budget_lanes = max(budget_lanes, 512)
            max_lanes = (int(0.4 * vmem_cap) // (nbuf * b_tile * C * elt)) // 128 * 128
            budget_lanes = min(budget_lanes, max(128, max_lanes))
            tile_s = min(budget_lanes, s_full)
    assert tile_s == S or tile_s % 128 == 0

    grid = (B // b_tile, pl.cdiv(S, tile_s))

    # ---- VMEM limit derived from actual block bytes (per-generation cap) ---
    x_block_bytes = b_tile * C * tile_s * elt
    out_block_bytes = b_tile * C * 4
    weight_bytes = 2 * C * Ch * 4
    scratch_bytes = 2 * b_tile * C * 4
    vmem_limit = (nbuf * x_block_bytes + 2 * out_block_bytes
                  + weight_bytes + scratch_bytes + (4 << 20))       # headroom
    vmem_limit = int(min(max(vmem_limit, 32 << 20), int(0.9 * vmem_cap)))

    kernel = functools.partial(
        _channel_attention_kernel,
        s_total=S, tile_s=tile_s, inv_s=1.0 / S)

    # Streamed x BlockSpec; optional deeper pipelining (v6e/v5e headroom).
    x_index_map = lambda b, s: (b, 0, s)
    if nbuf != 2:
        x_spec = pl.BlockSpec((b_tile, C, tile_s), x_index_map,
                              pipeline_mode=pl.Buffered(nbuf))
    else:
        x_spec = pl.BlockSpec((b_tile, C, tile_s), x_index_map)

    # This op is HBM-bandwidth bound on streaming x; hint the XLA scheduler.
    cost = pl.CostEstimate(
        flops=2 * B * C * S + 4 * B * (C * Ch + Ch * C),
        transcendentals=B * C,
        bytes_accessed=B * C * S * elt + weight_bytes + B * C * 4)

    out = pl.pallas_call(
        kernel,
        out_shape=jax.ShapeDtypeStruct((B, C), jnp.float32),
        grid_spec=pltpu.PrefetchScalarGridSpec(
            num_scalar_prefetch=0,
            grid=grid,
            in_specs=[
                x_spec,
                # Tiny weights: DMA once, stay resident across the whole grid.
                pl.BlockSpec(memory_space=pltpu.MemorySpace.VMEM),
                pl.BlockSpec(memory_space=pltpu.MemorySpace.VMEM),
            ],
            out_specs=pl.BlockSpec((b_tile, C), lambda b, s: (b, 0)),
            scratch_shapes=[
                pltpu.VMEM((b_tile, C), jnp.float32),   # running sum (f32)
                pltpu.VMEM((b_tile, C), jnp.float32),   # running max (f32)
            ],
        ),
        compiler_params=pltpu.CompilerParams(
            dimension_semantics=("parallel", "arbitrary"),
            vmem_limit_bytes=vmem_limit,
        ),
        cost_estimate=cost,
    )(x3, w1t, w2t)

    return out.reshape(B, C, 1, 1)


def channel_attention_ref(x, w1, w2):
    """Pure-JAX reference mirroring the PyTorch module."""
    xf = x.astype(jnp.float32)
    avg_p = jnp.mean(xf, axis=(2, 3))                   # (B, C)
    max_p = jnp.max(xf, axis=(2, 3))                    # (B, C)

    def mlp(p):
        h = jnp.maximum(p @ w1.T, 0.0)                  # (B, Ch)
        return h @ w2.T                                 # (B, C)

    out = mlp(avg_p) + mlp(max_p)
    return jax.nn.sigmoid(out)[:, :, None, None]


if __name__ == "__main__":
    key = jax.random.PRNGKey(0)
    k_x, k_w1, k_w2, k_x2, k_x3 = jax.random.split(key, 5)

    # in_planes must be divisible by 16 (module hard-codes // 16).
    B, C = 2, 32
    Ch = C // 16

    # fc1: Conv2d(C, C//16, 1, bias=False) weight -> (C//16, C) after squeezing 1x1
    w1 = jax.random.normal(k_w1, (Ch, C), dtype=jnp.float32) * 0.1
    # fc2: Conv2d(C//16, C, 1, bias=False) weight -> (C, C//16)
    w2 = jax.random.normal(k_w2, (C, Ch), dtype=jnp.float32) * 0.1

    # Case 1: S = 256, forced 128-lane tiles -> exercises the multi-step
    # streamed accumulation (init / accumulate / finalize) path.
    x1 = jax.random.normal(k_x, (B, C, 16, 16), dtype=jnp.float32)
    out1 = jax.block_until_ready(channel_attention(x1, w1, w2, tile_s=128))
    ref1 = channel_attention_ref(x1, w1, w2)
    assert out1.shape == (B, C, 1, 1)
    assert jnp.allclose(out1, ref1, atol=1e-5, rtol=1e-5)

    # Case 2: S = 169 (not a multiple of 128) -> exercises the gated edge tile
    # (interior tiles run the mask-free path).
    x2 = jax.random.normal(k_x2, (B, C, 13, 13), dtype=jnp.float32)
    out2 = jax.block_until_ready(channel_attention(x2, w1, w2))
    ref2 = channel_attention_ref(x2, w1, w2)
    assert jnp.allclose(out2, ref2, atol=1e-5, rtol=1e-5)

    # Case 3: B = 16 -> b_tile = 8, two grid points on the parallel B axis,
    # default (budgeted) spatial tile.
    x3 = jax.random.normal(k_x3, (16, C, 16, 16), dtype=jnp.float32)
    out3 = jax.block_until_ready(channel_attention(x3, w1, w2))
    ref3 = channel_attention_ref(x3, w1, w2)
    assert out3.shape == (16, C, 1, 1)
    assert jnp.allclose(out3, ref3, atol=1e-5, rtol=1e-5)

    # Case 4: bf16 input (halves streamed HBM bytes), f32 accumulation.
    x4 = x1.astype(jnp.bfloat16)
    out4 = jax.block_until_ready(channel_attention(x4, w1, w2, tile_s=128))
    ref4 = channel_attention_ref(x4, w1, w2)
    assert jnp.allclose(out4, ref4, atol=1e-4, rtol=1e-4)

    print("KERNEL_OK")
</pallas_src>

<mosaic_0001>
module attributes {stable_mosaic.version = 11 : i64} {
  func.func @_channel_attention_kernel(%arg0: i32, %arg1: i32, %arg2: memref<2x32x128xf32, #tpu.memory_space<vmem>>, %arg3: memref<32x2xf32, #tpu.memory_space<vmem>>, %arg4: memref<2x32xf32, #tpu.memory_space<vmem>>, %arg5: memref<2x32xf32, #tpu.memory_space<vmem>>, %arg6: memref<2x32xf32, #tpu.memory_space<vmem>>, %arg7: memref<2x32xf32, #tpu.memory_space<vmem>>) attributes {dimension_semantics = [#tpu.dimension_semantics<parallel>, #tpu.dimension_semantics<arbitrary>], iteration_bounds = array<i64: 1, 2>, scalar_prefetch = 0 : i64, scratch_operands = 2 : i64, tpu.core_type = #tpu.core_type<tc>, window_params = [{transform_indices = @transform_0, window_bounds = array<i64: 2, 32, 128>}, {pipeline_mode = #tpu.pipeline_mode<synchronous>, transform_indices = @transform_1, window_bounds = array<i64: 32, 2>}, {pipeline_mode = #tpu.pipeline_mode<synchronous>, transform_indices = @transform_2, window_bounds = array<i64: 2, 32>}, {transform_indices = @transform_3, window_bounds = array<i64: 2, 32>}]} {
    %c0_i32 = arith.constant 0 : i32
    %0 = arith.cmpi eq, %arg1, %c0_i32 : i32
    %1 = arith.extui %0 : i1 to i32
    %c0_i32_0 = arith.constant 0 : i32
    %2 = arith.cmpi ne, %1, %c0_i32_0 : i32
    scf.if %2 {
      %cst_13 = arith.constant 0.000000e+00 : f32
      %15 = vector.broadcast %cst_13 : f32 to vector<2x32xf32>
      %c0_14 = arith.constant 0 : index
      %c0_15 = arith.constant 0 : index
      %16 = vector.load %arg6[%c0_14, %c0_15] : memref<2x32xf32, #tpu.memory_space<vmem>>, vector<2x32xf32>
      tpu.vector_store %arg6[%c0_14, %c0_15], %15 {strides = array<i32>} : memref<2x32xf32, #tpu.memory_space<vmem>>, vector<2x32xf32>,
      %cst_16 = arith.constant 0xFF800000 : f32
      %17 = vector.broadcast %cst_16 : f32 to vector<2x32xf32>
      %c0_17 = arith.constant 0 : index
      %c0_18 = arith.constant 0 : index
      %18 = vector.load %arg7[%c0_17, %c0_18] : memref<2x32xf32, #tpu.memory_space<vmem>>, vector<2x32xf32>
      tpu.vector_store %arg7[%c0_17, %c0_18], %17 {strides = array<i32>} : memref<2x32xf32, #tpu.memory_space<vmem>>, vector<2x32xf32>,
    } else {
    }
    %c0 = arith.constant 0 : index
    %c0_1 = arith.constant 0 : index
    %c0_2 = arith.constant 0 : index
    %3 = vector.load %arg2[%c0, %c0_1, %c0_2] : memref<2x32x128xf32, #tpu.memory_space<vmem>>, vector<2x32x128xf32>
    %c0_3 = arith.constant 0 : index
    %c0_4 = arith.constant 0 : index
    %4 = vector.load %arg6[%c0_3, %c0_4] : memref<2x32xf32, #tpu.memory_space<vmem>>, vector<2x32xf32>
    %cst = arith.constant dense<0.000000e+00> : vector<2x32xf32>
    %5 = vector.multi_reduction <add>, %3, %cst [2] : vector<2x32x128xf32> to vector<2x32xf32>
    %6 = arith.addf %4, %5 : vector<2x32xf32>
    %c0_5 = arith.constant 0 : index
    %c0_6 = arith.constant 0 : index
    %7 = vector.load %arg6[%c0_5, %c0_6] : memref<2x32xf32, #tpu.memory_space<vmem>>, vector<2x32xf32>
    tpu.vector_store %arg6[%c0_5, %c0_6], %6 {strides = array<i32>} : memref<2x32xf32, #tpu.memory_space<vmem>>, vector<2x32xf32>,
    %c0_7 = arith.constant 0 : index
    %c0_8 = arith.constant 0 : index
    %8 = vector.load %arg7[%c0_7, %c0_8] : memref<2x32xf32, #tpu.memory_space<vmem>>, vector<2x32xf32>
    %cst_9 = arith.constant dense<0xFF800000> : vector<2x32xf32>
    %9 = vector.multi_reduction <maximumf>, %3, %cst_9 [2] : vector<2x32x128xf32> to vector<2x32xf32>
    %10 = arith.maximumf %8, %9 : vector<2x32xf32>
    %c0_10 = arith.constant 0 : index
    %c0_11 = arith.constant 0 : index
    %11 = vector.load %arg7[%c0_10, %c0_11] : memref<2x32xf32, #tpu.memory_space<vmem>>, vector<2x32xf32>
    tpu.vector_store %arg7[%c0_10, %c0_11], %10 {strides = array<i32>} : memref<2x32xf32, #tpu.memory_space<vmem>>, vector<2x32xf32>,
    %c1_i32 = arith.constant 1 : i32
    %12 = arith.cmpi eq, %arg1, %c1_i32 : i32
    %13 = arith.extui %12 : i1 to i32
    %c0_i32_12 = arith.constant 0 : i32
    %14 = arith.cmpi ne, %13, %c0_i32_12 : i32
    scf.if %14 {
      %c0_13 = arith.constant 0 : index
      %c0_14 = arith.constant 0 : index
      %15 = vector.load %arg6[%c0_13, %c0_14] : memref<2x32xf32, #tpu.memory_space<vmem>>, vector<2x32xf32>
      %cst_15 = arith.constant 3.906250e-03 : f32
      %16 = vector.broadcast %cst_15 : f32 to vector<2x32xf32>
      %17 = arith.mulf %15, %16 : vector<2x32xf32>
      %c0_16 = arith.constant 0 : index
      %c0_17 = arith.constant 0 : index
      %18 = vector.load %arg7[%c0_16, %c0_17] : memref<2x32xf32, #tpu.memory_space<vmem>>, vector<2x32xf32>
      %19 = tpu.concatenate %17, %18 in 0 : vector<2x32xf32>, vector<2x32xf32> -> vector<4x32xf32>
      %c0_18 = arith.constant 0 : index
      %c0_19 = arith.constant 0 : index
      %20 = vector.load %arg3[%c0_18, %c0_19] : memref<32x2xf32, #tpu.memory_space<vmem>>, vector<32x2xf32>
      %cst_20 = arith.constant dense<0.000000e+00> : vector<4x2xf32>
      %21 = tpu.matmul %19, %20, %cst_20 {dimension_numbers = #tpu.dot_dimension_numbers<[1], [0], [0], [1], [0, 0, 1, 1], [], []>} : vector<4x32xf32>, vector<32x2xf32>, vector<4x2xf32> -> vector<4x2xf32>
      %cst_21 = arith.constant 0.000000e+00 : f32
      %22 = vector.broadcast %cst_21 : f32 to vector<4x2xf32>
      %23 = arith.maximumf %21, %22 : vector<4x2xf32>
      %c0_22 = arith.constant 0 : index
      %c0_23 = arith.constant 0 : index
      %24 = vector.load %arg4[%c0_22, %c0_23] : memref<2x32xf32, #tpu.memory_space<vmem>>, vector<2x32xf32>
      %cst_24 = arith.constant dense<0.000000e+00> : vector<4x32xf32>
      %25 = tpu.matmul %23, %24, %cst_24 {dimension_numbers = #tpu.dot_dimension_numbers<[1], [0], [0], [1], [0, 0, 1, 1], [], []>} : vector<4x2xf32>, vector<2x32xf32>, vector<4x32xf32> -> vector<4x32xf32>
      %26 = vector.extract_strided_slice %25 {offsets = [0, 0], sizes = [2, 32], strides = [1, 1]} : vector<4x32xf32> to vector<2x32xf32>
      %27 = vector.extract_strided_slice %25 {offsets = [2, 0], sizes = [2, 32], strides = [1, 1]} : vector<4x32xf32> to vector<2x32xf32>
      %28 = arith.addf %26, %27 : vector<2x32xf32>
      %29 = arith.negf %28 : vector<2x32xf32>
      %30 = math.exp %29 : vector<2x32xf32>
      %cst_25 = arith.constant 1.000000e+00 : f32
      %31 = vector.broadcast %cst_25 : f32 to vector<2x32xf32>
      %32 = arith.addf %31, %30 : vector<2x32xf32>
      %33 = arith.divf %31, %32 : vector<2x32xf32>
      %c0_26 = arith.constant 0 : index
      %c0_27 = arith.constant 0 : index
      %34 = vector.load %arg5[%c0_26, %c0_27] : memref<2x32xf32, #tpu.memory_space<vmem>>, vector<2x32xf32>
      tpu.vector_store %arg5[%c0_26, %c0_27], %33 {strides = array<i32>} : memref<2x32xf32, #tpu.memory_space<vmem>>, vector<2x32xf32>,
    } else {
    }
    return
  }
  func.func @transform_0(%arg0: i32, %arg1: i32) -> (i32, i32, i32) {
    %c0_i32 = arith.constant 0 : i32
    %c0_i32_0 = arith.constant 0 : i32
    return %arg0, %c0_i32, %arg1 : i32, i32, i32
  }
  func.func @transform_1(%arg0: i32, %arg1: i32) -> (i32, i32) {
    %c0_i32 = arith.constant 0 : i32
    %c0_i32_0 = arith.constant 0 : i32
    %c0_i32_1 = arith.constant 0 : i32
    return %c0_i32, %c0_i32_0 : i32, i32
  }
  func.func @transform_2(%arg0: i32, %arg1: i32) -> (i32, i32) {
    %c0_i32 = arith.constant 0 : i32
    %c0_i32_0 = arith.constant 0 : i32
    %c0_i32_1 = arith.constant 0 : i32
    return %c0_i32, %c0_i32_0 : i32, i32
  }
  func.func @transform_3(%arg0: i32, %arg1: i32) -> (i32, i32) {
    %c0_i32 = arith.constant 0 : i32
    %c0_i32_0 = arith.constant 0 : i32
    return %arg0, %c0_i32 : i32, i32
  }
}

</mosaic_0001>

<llo_original>
// kernel: tpu_custom_call.1
$region0: #{tpu_custom_call.1}
  #allocation0 [shape = 'u32[]', space=smem, size = 0x4, offset = 0x4, fixed_abs, tag = 'smem constant byte address 0x4 - core index']
  #allocation1 [shape = 'u32[144,128]{1,0:T(1,128)}', space=vmem, size = 0x12000, scoped, tag = 'internal scratch']
  #allocation2 [shape = 'f32[2,32]{1,0:T(2,128)}', space=vmem, size = 0x400, scoped, tag = 'scratch operand']
  #allocation3 [shape = 'f32[2,32]{1,0:T(2,128)}', space=vmem, size = 0x400, scoped, tag = 'scratch operand']
  %s0 = inlined_call_operand.hbm [shape: f32[2,32,256], index: 0, kind: input, shape index: {}]
  %s1 = inlined_call_operand.vmem [shape: f32[32,2], index: 1, kind: input, shape index: {}]
  %s2 = inlined_call_operand.vmem [shape: f32[2,32], index: 2, kind: input, shape index: {}]
  %s3 = inlined_call_operand.hbm [shape: f32[2,32], index: 3, kind: output, shape index: {}]
  %s4 = sld [smem:[#allocation0]]
  $region57: #{tpu_custom_call.1} parent=0
    _
  %s6 = ssub.s32 1, %s4
  %s7 = scalar_select 0, %s6, %s4
  $region1: #{tpu_custom_call.1} parent=0
    #allocation4 [shape = 'u8[65536]{0}', space=vmem, size = 0x10000, scoped, tag = 'input window, operand 0']
    #allocation5 [shape = 's32[2]{0}', space=sflag, size = 0x8, scoped, tag = 'scoped memory for tpu_custom_call.1']
    #allocation6 [shape = 's32[2]{0}', space=sflag, size = 0x8, scoped, tag = 'scoped memory for tpu_custom_call.1']
    #allocation7 [shape = 'u8[1024]{0}', space=vmem, size = 0x400, scoped, tag = 'output window, operand 0, single buffered']
    %8 = vsyncpa [#allocation5], 0
    %s9 = scalar_lea.sflag [#allocation5], 1
    %10 = vsyncpa %s9, 0
    %11 = vsyncpa [#allocation6], 0
    loop: start=0, step=1, limit=4
    $region2: #{tpu_custom_call.1} parent=1 // loop_pre_header
      _
    $region3: #{tpu_custom_call.1} parent=1 // loop_header
      %s13 = sphi 0, %s17
      %p14 = scmp.ge.s32.totalorder %s13, 4
      %s20 = sphi 0, %s32
      %s21 = sphi 0, %s28
      %s22 = sphi 0, %s20
      %s23 = sphi 0, %s21
      %s24 = sphi 0, %s22
      %s25 = sphi 0, %s23
      %s37 = sphi 0, %s39
      %s40 = sphi 0, %s37
      %s41 = sphi 0, %s40
      %s57 = sphi 0, %s41
      %s61 = sphi 0, %s61
      %s63 = sphi 0, %s61
      %s64 = sphi 0, %s63
      %s78 = sphi 0, %s64
      %s82 = sphi 0, %s82
      %s84 = sphi 0, %s82
      %s85 = sphi 0, %s84
      %s99 = sphi 0, %s85
      %s105 = sphi 0, %s107
      %s108 = sphi 0, %s105
      %s109 = sphi 0, %s108
      %s125 = sphi 0, %s109
    $region4: #{tpu_custom_call.1} parent=1 // loop_header_branch
      %16 = sbr.rel (%p14) target = $region8
    $region5: #{tpu_custom_call.1} parent=1 // loop_body
      %s18 = ssub.s32 %s13, 1
      %s19 = ssub.s32 %s13, 2
      %s26 = sadd.s32 1, %s21
      %p27 = scmp.ge.s32.totalorder %s26, 2
      %s28 = scalar_select %p27, 0, %s26
      %s29 = sadd.s32 1, %s20
      %s30 = scalar_select %p27, %s29, %s20
      %p31 = scmp.ge.s32.totalorder %s30, 1
      %s32 = scalar_select %p31, 0, %s30
      %s33 = ssub.s32 %s20, %s32
      %s34 = ssub.s32 %s21, %s28
      %s35 = sor.u32 %s33, %s34
      %p36 = scmp.eq.s32.totalorder %s35, 0
      %s38 = sadd.s32 %s37, 1
      %s39 = scalar_select %p36, %s37, %s38
      %p42 = pneg %p36
      %p43 = scmp.eq.s32.totalorder %s13, 1
      %p44 = por %p42, %p43
      %p45 = scmp.ne.s32.totalorder %s37, %s40
      %p46 = scmp.eq.s32.totalorder %s13, 0
      %p47 = por %p45, %p46
      %p48 = scmp.ne.s32.totalorder %s37, %s40
      %p49 = scmp.eq.s32.totalorder %s18, 1
      %p50 = por %p48, %p49
      %p51 = scmp.ne.s32.totalorder %s40, %s41
      %p52 = scmp.eq.s32.totalorder %s18, 0
      %p53 = por %p51, %p52
      %p54 = scmp.ne.s32.totalorder %s40, %s41
      %p55 = scmp.eq.s32.totalorder %s19, 1
      %p56 = por %p54, %p55
      %p58 = scmp.ne.s32.totalorder %s41, %s57
      %p59 = scmp.eq.s32.totalorder %s19, 0
      %p60 = por %p58, %p59
      %s62 = sadd.s32 %s61, 1
      %p65 = scmp.eq.s32.totalorder %s13, 1
      %p66 = scmp.ne.s32.totalorder %s61, %s63
      %p67 = scmp.eq.s32.totalorder %s13, 0
      %p68 = por %p66, %p67
      %p69 = scmp.ne.s32.totalorder %s61, %s63
      %p70 = scmp.eq.s32.totalorder %s18, 1
      %p71 = por %p69, %p70
      %p72 = scmp.ne.s32.totalorder %s63, %s64
      %p73 = scmp.eq.s32.totalorder %s18, 0
      %p74 = por %p72, %p73
      %p75 = scmp.ne.s32.totalorder %s63, %s64
      %p76 = scmp.eq.s32.totalorder %s19, 1
      %p77 = por %p75, %p76
      %p79 = scmp.ne.s32.totalorder %s64, %s78
      %p80 = scmp.eq.s32.totalorder %s19, 0
      %p81 = por %p79, %p80
      %s83 = sadd.s32 %s82, 1
      %p86 = scmp.eq.s32.totalorder %s13, 1
      %p87 = scmp.ne.s32.totalorder %s82, %s84
      %p88 = scmp.eq.s32.totalorder %s13, 0
      %p89 = por %p87, %p88
      %p90 = scmp.ne.s32.totalorder %s82, %s84
      %p91 = scmp.eq.s32.totalorder %s18, 1
      %p92 = por %p90, %p91
      %p93 = scmp.ne.s32.totalorder %s84, %s85
      %p94 = scmp.eq.s32.totalorder %s18, 0
      %p95 = por %p93, %p94
      %p96 = scmp.ne.s32.totalorder %s84, %s85
      %p97 = scmp.eq.s32.totalorder %s19, 1
      %p98 = por %p96, %p97
      %p100 = scmp.ne.s32.totalorder %s85, %s99
      %p101 = scmp.eq.s32.totalorder %s19, 0
      %p102 = por %p100, %p101
      %s103 = ssub.s32 %s20, %s32
      %p104 = scmp.eq.s32.totalorder %s103, 0
      %s106 = sadd.s32 %s105, 1
      %s107 = scalar_select %p104, %s105, %s106
      %p110 = pneg %p104
      %p111 = scmp.eq.s32.totalorder %s13, 1
      %p112 = por %p110, %p111
      %p113 = scmp.ne.s32.totalorder %s105, %s108
      %p114 = scmp.eq.s32.totalorder %s13, 0
      %p115 = por %p113, %p114
      %p116 = scmp.ne.s32.totalorder %s105, %s108
      %p117 = scmp.eq.s32.totalorder %s18, 1
      %p118 = por %p116, %p117
      %p119 = scmp.ne.s32.totalorder %s108, %s109
      %p120 = scmp.eq.s32.totalorder %s18, 0
      %p121 = por %p119, %p120
      %p122 = scmp.ne.s32.totalorder %s108, %s109
      %p123 = scmp.eq.s32.totalorder %s19, 1
      %p124 = por %p122, %p123
      %p126 = scmp.ne.s32.totalorder %s109, %s125
      %p127 = scmp.eq.s32.totalorder %s19, 0
      %p128 = por %p126, %p127
      %p129 = scmp.le.s32.totalorder 1, %s13
      %p130 = scmp.lt.s32.totalorder %s13, 3
      %p131 = pnand %p129, %p130
      %p132 = pneg %p131
      // Predicated region
      $region9: #{tpu_custom_call.1} parent=5 // pred_check
        _
      $region10: #{tpu_custom_call.1} parent=5 // pred_check_branch
        %134 = sbr.rel (%p131) target = $region12
      $region11: #{tpu_custom_call.1} parent=5 // pred_region
        %s135 = ssub.s32 %s13, 1
        // Predicated region
        $region13: #{tpu_custom_call.1} parent=11 // pred_check
          %p136 = pneg %p74
        $region14: #{tpu_custom_call.1} parent=11 // pred_check_branch
          %138 = sbr.rel (%p136) target = $region16
        $region15: #{tpu_custom_call.1} parent=11 // pred_region
          _
        $region16: #{tpu_custom_call.1} parent=11 // pred_fallthru
          _
        // Predicated region
        $region17: #{tpu_custom_call.1} parent=11 // pred_check
          %p139 = pneg %p95
        $region18: #{tpu_custom_call.1} parent=11 // pred_check_branch
          %141 = sbr.rel (%p139) target = $region20
        $region19: #{tpu_custom_call.1} parent=11 // pred_region
          _
        $region20: #{tpu_custom_call.1} parent=11 // pred_fallthru
          _
      $region12: #{tpu_custom_call.1} parent=5 // pred_fallthru
        _
      %p142 = scmp.lt.s32.totalorder %s13, 2
      // Predicated region
      $region21: #{tpu_custom_call.1} parent=5 // pred_check
        %p143 = pneg %p142
      $region22: #{tpu_custom_call.1} parent=5 // pred_check_branch
        %145 = sbr.rel (%p143) target = $region24
      $region23: #{tpu_custom_call.1} parent=5 // pred_region
        // Predicated region
        $region25: #{tpu_custom_call.1} parent=23 // pred_check
          %p146 = pneg %p47
        $region26: #{tpu_custom_call.1} parent=23 // pred_check_branch
          %148 = sbr.rel (%p146) target = $region28
        $region27: #{tpu_custom_call.1} parent=23 // pred_region
          %s149 = sand.u32 %s37, 1
          %s150 = scalar_lea.sflag [#allocation5], %s149
          %s151 = sand.u32 %s37, 1
          %s152 = smul.addr %s151, 64
          %s153 = scalar_lea.vmem [#allocation4], %s152
          %s154 = smul.u32 2, %s20
          %s156 = ssub.s32 1024, 1024
          %157 = vsyncadd %s150, %s156
          %s158 = smul.addr %s154, 8
          %s159 = sadd.s32 %s21, %s158
          %s160 = smul.addr %s159, 128
          %s161 = scalar_lea.hbm %s0, %s160
          %s162 = sshll.u32 %s153, 4
          %s163 = int_to_ptr.vmem [resolvable:$true] %s162
          %168 = dma.hbm_to_vmem [thread:$0]  %s161, 1024, %s163, %s150, 256, 128, 8
        $region28: #{tpu_custom_call.1} parent=23 // pred_fallthru
          _
      $region24: #{tpu_custom_call.1} parent=5 // pred_fallthru
        _
      %p169 = scmp.le.s32.totalorder 1, %s13
      %p170 = scmp.lt.s32.totalorder %s13, 3
      %p171 = pnand %p169, %p170
      %p172 = pneg %p171
      // Predicated region
      $region29: #{tpu_custom_call.1} parent=5 // pred_check
        _
      $region30: #{tpu_custom_call.1} parent=5 // pred_check_branch
        %174 = sbr.rel (%p171) target = $region32
      $region31: #{tpu_custom_call.1} parent=5 // pred_region
        %s175 = ssub.s32 %s13, 1
        %s176 = sand.u32 %s40, 1
        %s177 = scalar_lea.sflag [#allocation5], %s176
        %s178 = sand.u32 %s40, 1
        %s179 = smul.addr %s178, 64
        %s180 = scalar_lea.vmem [#allocation4], %s179
        // Predicated region
        $region33: #{tpu_custom_call.1} parent=31 // pred_check
          %p181 = pneg %p53
        $region34: #{tpu_custom_call.1} parent=31 // pred_check_branch
          %183 = sbr.rel (%p181) target = $region36
        $region35: #{tpu_custom_call.1} parent=31 // pred_region
          %184 = dma.done %s177, 1024
        $region36: #{tpu_custom_call.1} parent=31 // pred_fallthru
          _
        %s185 = sand.u32 %s40, 1
        %s186 = scalar_lea.sflag [#allocation5], %s185
        %s187 = sand.u32 %s40, 1
        %s188 = smul.addr %s187, 64
        %s189 = scalar_lea.vmem [#allocation4], %s188
        %p190 = pneg %p53
        %p191 = pneg %p50
        %p192 = pneg %p74
        %p193 = pneg %p71
        %p194 = pneg %p95
        %p195 = pneg %p92
        %p196 = pneg %p121
        %p197 = pneg %p118
        %s198 = smul.u32 2, %s22
        %p199 = scmp.eq.s32.totalorder %s23, 0
        // Predicated region
        $region37: #{tpu_custom_call.1} parent=31 // pred_check
          %p200 = pneg %p199
        $region38: #{tpu_custom_call.1} parent=31 // pred_check_branch
          %202 = sbr.rel (%p200) target = $region40
        $region39: #{tpu_custom_call.1} parent=31 // pred_region
          %vm203 = vcmask 254976
          %204 = vst.msk [vmem:[#allocation2] sm:$0x3] %vm203, 0.0
          %205 = vst.msk [vmem:[#allocation3] sm:$0x3] %vm203, -inf
        $region40: #{tpu_custom_call.1} parent=31 // pred_fallthru
          _
        %v206 = vld [vmem:[%s180] sm:$0xff]
        %v207 = vld [vmem:[%s180 + $0x8] sm:$0xff]
        %v208 = vld [vmem:[%s180 + $0x10] sm:$0xff]
        %v209 = vld [vmem:[%s180 + $0x18] sm:$0xff]
        %v210 = vld [vmem:[%s180 + $0x20] sm:$0xff]
        %v211 = vld [vmem:[%s180 + $0x28] sm:$0xff]
        %v212 = vld [vmem:[%s180 + $0x30] sm:$0xff]
        %v213 = vld [vmem:[%s180 + $0x38] sm:$0xff]
        %v214 = vld [vmem:[#allocation2] sm:$0x3]
        %215 = vadd.xlane.f32.xlu0 %v206
        %v216 = vpop.xlane.xlu0 %215
        %217 = vadd.xlane.f32.xlu0 %v207
        %v218 = vpop.xlane.xlu0 %217
        %219 = vadd.xlane.f32.xlu0 %v208
        %v220 = vpop.xlane.xlu0 %219
        %221 = vadd.xlane.f32.xlu0 %v209
        %v222 = vpop.xlane.xlu0 %221
        %223 = vadd.xlane.f32.xlu0 %v210
        %v224 = vpop.xlane.xlu0 %223
        %225 = vadd.xlane.f32.xlu0 %v211
        %v226 = vpop.xlane.xlu0 %225
        %227 = vadd.xlane.f32.xlu0 %v212
        %v228 = vpop.xlane.xlu0 %227
        %229 = vadd.xlane.f32.xlu0 %v213
        %v230 = vpop.xlane.xlu0 %229
        %v239 = vlaneseq
        %v240 = vand.u32 %v239, 127
        %v241 = vlaneseq
        %v242 = vshrl.u32 %v241, 7
        %v243 = vsub.s32 %v240, %v242
        %v244 = vrot.slane %v216, %v243
        %v245 = vadd.s32 %v240, 4294967288
        %v246 = vlaneseq
        %v247 = vshrl.u32 %v246, 7
        %v248 = vsub.s32 %v245, %v247
        %v249 = vrot.slane %v218, %v248
        %vm250 = vcmask 130112
        %v251 = vsel %vm250, %v249, %v244
        %v252 = vadd.s32 %v240, 4294967280
        %v253 = vlaneseq
        %v254 = vshrl.u32 %v253, 7
        %v255 = vsub.s32 %v252, %v254
        %v256 = vrot.slane %v220, %v255
        %vm257 = vcmask 195712
        %v258 = vsel %vm257, %v256, %v251
        %v259 = vadd.s32 %v240, 4294967272
        %v260 = vlaneseq
        %v261 = vshrl.u32 %v260, 7
        %v262 = vsub.s32 %v259, %v261
        %v263 = vrot.slane %v222, %v262
        %vm264 = vcmask 261312
        %v265 = vsel %vm264, %v263, %v258
        %v266 = vlaneseq
        %v267 = vshrl.u32 %v266, 7
        %v268 = vsub.s32 %v240, %v267
        %v269 = vrot.slane %v224, %v268
        %v270 = vlaneseq
        %v271 = vshrl.u32 %v270, 7
        %v272 = vsub.s32 %v245, %v271
        %v273 = vrot.slane %v226, %v272
        %v274 = vsel %vm250, %v273, %v269
        %v275 = vlaneseq
        %v276 = vshrl.u32 %v275, 7
        %v277 = vsub.s32 %v252, %v276
        %v278 = vrot.slane %v228, %v277
        %v279 = vsel %vm257, %v278, %v274
        %v280 = vlaneseq
        %v281 = vshrl.u32 %v280, 7
        %v282 = vsub.s32 %v259, %v281
        %v283 = vrot.slane %v230, %v282
        %v284 = vsel %vm264, %v283, %v279
        %vm285 = vcmask 1041409
        %v286 = vsel %vm285, %v284, %v265
        %v288 = vadd.f32 %v214, %v286
        %vm289 = vcmask 254976
        %290 = vst.msk [vmem:[#allocation2] sm:$0x3] %vm289, %v288
        %v291 = vld [vmem:[#allocation3] sm:$0x3]
        %292 = vmax.xlane.f32.xlu0 %v206
        %v293 = vpop.xlane.xlu0 %292
        %294 = vmax.xlane.f32.xlu0 %v207
        %v295 = vpop.xlane.xlu0 %294
        %296 = vmax.xlane.f32.xlu0 %v208
        %v297 = vpop.xlane.xlu0 %296
        %298 = vmax.xlane.f32.xlu0 %v209
        %v299 = vpop.xlane.xlu0 %298
        %300 = vmax.xlane.f32.xlu0 %v210
        %v301 = vpop.xlane.xlu0 %300
        %302 = vmax.xlane.f32.xlu0 %v211
        %v303 = vpop.xlane.xlu0 %302
        %304 = vmax.xlane.f32.xlu0 %v212
        %v305 = vpop.xlane.xlu0 %304
        %306 = vmax.xlane.f32.xlu0 %v213
        %v307 = vpop.xlane.xlu0 %306
        %v316 = vlaneseq
        %v317 = vshrl.u32 %v316, 7
        %v318 = vsub.s32 %v240, %v317
        %v319 = vrot.slane %v293, %v318
        %v320 = vlaneseq
        %v321 = vshrl.u32 %v320, 7
        %v322 = vsub.s32 %v245, %v321
        %v323 = vrot.slane %v295, %v322
        %v324 = vsel %vm250, %v323, %v319
        %v325 = vlaneseq
        %v326 = vshrl.u32 %v325, 7
        %v327 = vsub.s32 %v252, %v326
        %v328 = vrot.slane %v297, %v327
        %v329 = vsel %vm257, %v328, %v324
        %v330 = vlaneseq
        %v331 = vshrl.u32 %v330, 7
        %v332 = vsub.s32 %v259, %v331
        %v333 = vrot.slane %v299, %v332
        %v334 = vsel %vm264, %v333, %v329
        %v335 = vlaneseq
        %v336 = vshrl.u32 %v335, 7
        %v337 = vsub.s32 %v240, %v336
        %v338 = vrot.slane %v301, %v337
        %v339 = vlaneseq
        %v340 = vshrl.u32 %v339, 7
        %v341 = vsub.s32 %v245, %v340
        %v342 = vrot.slane %v303, %v341
        %v343 = vsel %vm250, %v342, %v338
        %v344 = vlaneseq
        %v345 = vshrl.u32 %v344, 7
        %v346 = vsub.s32 %v252, %v345
        %v347 = vrot.slane %v305, %v346
        %v348 = vsel %vm257, %v347, %v343
        %v349 = vlaneseq
        %v350 = vshrl.u32 %v349, 7
        %v351 = vsub.s32 %v259, %v350
        %v352 = vrot.slane %v307, %v351
        %v353 = vsel %vm264, %v352, %v348
        %v354 = vsel %vm285, %v353, %v334
        %v356 = vmax.f32 %v291, %v354
        %357 = vst.msk [vmem:[#allocation3] sm:$0x3] %vm289, %v356
        %p358 = scmp.eq.s32.totalorder %s23, 1
        // Predicated region
        $region41: #{tpu_custom_call.1} parent=31 // pred_check
          %p359 = pneg %p358
        $region42: #{tpu_custom_call.1} parent=31 // pred_check_branch
          %361 = sbr.rel (%p359) target = $region44
        $region43: #{tpu_custom_call.1} parent=31 // pred_region
          %v362 = vld [vmem:[#allocation2] sm:$0x3]
          %v363 = vmul.f32 %v362, 0.00390625
          %v364 = vld [vmem:[#allocation3] sm:$0x3]
          %v366 = vrot.slane %v364, 6
          %vm368 = vcmask 1041408
          %v369 = vsel %vm368, %v363, %v366
          %v370 = vld [vmem:[%s1] sm:$0xff]
          %v371 = vld [vmem:[%s1 + $0x8] sm:$0xff]
          %v372 = vld [vmem:[%s1 + $0x10] sm:$0xff]
          %v373 = vld [vmem:[%s1 + $0x18] sm:$0xff]
          %vm374 = vcmask 261120
          %v376 = vsel %vm374, %v369, 0
          %378 = vmatprep.subr.mxu0 0.0
          %379 = vmatpush1.msra.mxu0 %v370
          %380 = vmatprep.subr.mxu0 0.0
          %381 = vmatpush1.msra.mxu0 %v371
          %382 = vmatprep.subr.mxu0 0.0
          %383 = vmatpush1.msra.mxu0 %v372
          %384 = vmatprep.subr.mxu0 0.0
          %385 = vmatpush1.msra.mxu0 %v373
          %386 = vmatprep.subr.mxu0 0.0
          %387 = vmatpush1.msra.mxu0 0.0
          %388 = vmatprep.subr.mxu0 0.0
          %389 = vmatpush1.msra.mxu0 0.0
          %390 = vmatprep.subr.mxu0 0.0
          %391 = vmatpush1.msra.mxu0 0.0
          %392 = vmatprep.subr.mxu0 0.0
          %393 = vmatpush1.msra.mxu0 0.0
          %394 = vmatprep.subr.mxu0 0.0
          %395 = vmatpush1.msra.mxu0 0.0
          %396 = vmatprep.subr.mxu0 0.0
          %397 = vmatpush1.msra.mxu0 0.0
          %398 = vmatprep.subr.mxu0 0.0
          %399 = vmatpush1.msra.mxu0 0.0
          %400 = vmatprep.subr.mxu0 0.0
          %401 = vmatpush1.msra.mxu0 0.0
          %402 = vmatprep.subr.mxu0 0.0
          %403 = vmatpush1.msra.mxu0 0.0
          %404 = vmatprep.subr.mxu0 0.0
          %405 = vmatpush1.msra.mxu0 0.0
          %406 = vmatprep.subr.mxu0 0.0
          %407 = vmatpush1.msra.mxu0 0.0
          %408 = vmatprep.subr.mxu0 0.0
          %409 = vmatpush1.msra.mxu0 0.0
          %410 = vmatprep.subr.mxu0 0.0
          %411 = vmatpush1.msra.mxu0 0.0
          %412 = vmatprep.subr.mxu0 0.0
          %413 = vmatpush1.msra.mxu0 0.0
          %414 = vmatprep.subr.mxu0 0.0
          %415 = vmatpush1.msra.mxu0 0.0
          %416 = vmatprep.subr.mxu0 0.0
          %417 = vmatpush1.msra.mxu0 0.0
          %418 = vmatprep.subr.mxu0 0.0
          %419 = vmatpush1.msra.mxu0 0.0
          %420 = vmatprep.subr.mxu0 0.0
          %421 = vmatpush1.msra.mxu0 0.0
          %422 = vmatprep.subr.mxu0 0.0
          %423 = vmatpush1.msra.mxu0 0.0
          %424 = vmatprep.subr.mxu0 0.0
          %425 = vmatpush1.msra.mxu0 0.0
          %426 = vmatprep.subr.mxu0 0.0
          %427 = vmatpush1.msra.mxu0 0.0
          %428 = vmatprep.subr.mxu0 0.0
          %429 = vmatpush1.msra.mxu0 0.0
          %430 = vmatprep.subr.mxu0 0.0
          %431 = vmatpush1.msra.mxu0 0.0
          %432 = vmatprep.subr.mxu0 0.0
          %433 = vmatpush1.msra.mxu0 0.0
          %434 = vmatprep.subr.mxu0 0.0
          %435 = vmatpush1.msra.mxu0 0.0
          %436 = vmatprep.subr.mxu0 0.0
          %437 = vmatpush1.msra.mxu0 0.0
          %438 = vmatprep.subr.mxu0 0.0
          %439 = vmatpush1.msra.mxu0 0.0
          %440 = vmatprep.subr.mxu0 0.0
          %441 = vmatpush1.msra.mxu0 0.0
          %442 = vmatprep.mubr.f32.mxu0 0.0
          %443 = vmatmul.mubr.f32.gmra.mrb[0].mxu0 %v376
          %v444 = vpop.f32.mrb[0].mxu0
          %v445 = vadd.f32 0.0, %v444
          %v446 = vpop.f32.mrb[0].mxu0
          %447 = vdwg.mxu0
          %v448 = vmax.f32 %v445, 0.0
          %v449 = vld [vmem:[%s2] sm:$0x3]
          %vm450 = vcmask 15360
          %v452 = vsel %vm450, %v448, 0
          %v455 = vsel %vm368, %v449, 0
          %457 = vmatprep.subr.mxu0 0.0
          %458 = vmatpush1.msra.mxu0 %v455
          %459 = vmatprep.subr.mxu0 0.0
          %460 = vmatpush1.msra.mxu0 0.0
          %461 = vmatprep.subr.mxu0 0.0
          %462 = vmatpush1.msra.mxu0 0.0
          %463 = vmatprep.subr.mxu0 0.0
          %464 = vmatpush1.msra.mxu0 0.0
          %465 = vmatprep.subr.mxu0 0.0
          %466 = vmatpush1.msra.mxu0 0.0
          %467 = vmatprep.subr.mxu0 0.0
          %468 = vmatpush1.msra.mxu0 0.0
          %469 = vmatprep.subr.mxu0 0.0
          %470 = vmatpush1.msra.mxu0 0.0
          %471 = vmatprep.subr.mxu0 0.0
          %472 = vmatpush1.msra.mxu0 0.0
          %473 = vmatprep.subr.mxu0 0.0
          %474 = vmatpush1.msra.mxu0 0.0
          %475 = vmatprep.subr.mxu0 0.0
          %476 = vmatpush1.msra.mxu0 0.0
          %477 = vmatprep.subr.mxu0 0.0
          %478 = vmatpush1.msra.mxu0 0.0
          %479 = vmatprep.subr.mxu0 0.0
          %480 = vmatpush1.msra.mxu0 0.0
          %481 = vmatprep.subr.mxu0 0.0
          %482 = vmatpush1.msra.mxu0 0.0
          %483 = vmatprep.subr.mxu0 0.0
          %484 = vmatpush1.msra.mxu0 0.0
          %485 = vmatprep.subr.mxu0 0.0
          %486 = vmatpush1.msra.mxu0 0.0
          %487 = vmatprep.subr.mxu0 0.0
          %488 = vmatpush1.msra.mxu0 0.0
          %489 = vmatprep.subr.mxu0 0.0
          %490 = vmatpush1.msra.mxu0 0.0
          %491 = vmatprep.subr.mxu0 0.0
          %492 = vmatpush1.msra.mxu0 0.0
          %493 = vmatprep.subr.mxu0 0.0
          %494 = vmatpush1.msra.mxu0 0.0
          %495 = vmatprep.subr.mxu0 0.0
          %496 = vmatpush1.msra.mxu0 0.0
          %497 = vmatprep.subr.mxu0 0.0
          %498 = vmatpush1.msra.mxu0 0.0
          %499 = vmatprep.subr.mxu0 0.0
          %500 = vmatpush1.msra.mxu0 0.0
          %501 = vmatprep.subr.mxu0 0.0
          %502 = vmatpush1.msra.mxu0 0.0
          %503 = vmatprep.subr.mxu0 0.0
          %504 = vmatpush1.msra.mxu0 0.0
          %505 = vmatprep.subr.mxu0 0.0
          %506 = vmatpush1.msra.mxu0 0.0
          %507 = vmatprep.subr.mxu0 0.0
          %508 = vmatpush1.msra.mxu0 0.0
          %509 = vmatprep.subr.mxu0 0.0
          %510 = vmatpush1.msra.mxu0 0.0
          %511 = vmatprep.subr.mxu0 0.0
          %512 = vmatpush1.msra.mxu0 0.0
          %513 = vmatprep.subr.mxu0 0.0
          %514 = vmatpush1.msra.mxu0 0.0
          %515 = vmatprep.subr.mxu0 0.0
          %516 = vmatpush1.msra.mxu0 0.0
          %517 = vmatprep.subr.mxu0 0.0
          %518 = vmatpush1.msra.mxu0 0.0
          %519 = vmatprep.subr.mxu0 0.0
          %520 = vmatpush1.msra.mxu0 0.0
          %521 = vmatprep.mubr.f32.mxu0 0.0
          %522 = vmatmul.mubr.f32.gmra.mrb[0].mxu0 %v452
          %v523 = vpop.f32.mrb[0].mxu0
          %v524 = vadd.f32 0.0, %v523
          %v525 = vpop.f32.mrb[0].mxu0
          %526 = vdwg.mxu0
          %v528 = vrot.slane %v524, 2
          %v530 = vadd.f32 %v524, %v528
          %v531 = vxor.u32 %v530, 2147483648
          %v532 = vmul.f32 %v531, 1.442695
          %v533 = vpow.pop %v532
          %v534 = vadd.f32 %v533, 1.0
          %v535 = vrcp.pop %v534
          %v536 = vmul.f32 1.0, %v535
          %537 = vst.msk [vmem:[#allocation7] sm:$0x3] %vm289, %v536
        $region44: #{tpu_custom_call.1} parent=31 // pred_fallthru
          _
        // Predicated region
        $region45: #{tpu_custom_call.1} parent=31 // pred_check
          %p538 = pneg %p118
        $region46: #{tpu_custom_call.1} parent=31 // pred_check_branch
          %540 = sbr.rel (%p538) target = $region48
        $region47: #{tpu_custom_call.1} parent=31 // pred_region
          %s542 = ssub.s32 32, 32
          %543 = vsyncadd [#allocation6], %s542
          %s544 = smul.addr %s22, 32
          %s545 = scalar_lea.hbm %s3, %s544
          %s547 = sshll.u32 [#allocation7], 4
          %s548 = int_to_ptr.vmem [resolvable:$true] %s547
          %550 = dma.vmem_to_hbm [thread:$0]  %s548, 32, %s545, [#allocation6]
        $region48: #{tpu_custom_call.1} parent=31 // pred_fallthru
          _
        // Predicated region
        $region49: #{tpu_custom_call.1} parent=31 // pred_check
          %p551 = pneg %p118
        $region50: #{tpu_custom_call.1} parent=31 // pred_check_branch
          %553 = sbr.rel (%p551) target = $region52
        $region51: #{tpu_custom_call.1} parent=31 // pred_region
          %554 = dma.done [#allocation6], 32
        $region52: #{tpu_custom_call.1} parent=31 // pred_fallthru
          _
      $region32: #{tpu_custom_call.1} parent=5 // pred_fallthru
        _
      %p555 = scmp.le.s32.totalorder 2, %s13
      // Predicated region
      $region53: #{tpu_custom_call.1} parent=5 // pred_check
        %p556 = pneg %p555
      $region54: #{tpu_custom_call.1} parent=5 // pred_check_branch
        %558 = sbr.rel (%p556) target = $region56
      $region55: #{tpu_custom_call.1} parent=5 // pred_region
        %s559 = ssub.s32 %s13, 2
      $region56: #{tpu_custom_call.1} parent=5 // pred_fallthru
        _
    $region6: #{tpu_custom_call.1} parent=1 // loop_footer
      %s17 = sadd.s32 1, %s13
    $region7: #{tpu_custom_call.1} parent=1 // loop_footer_branch
      %12 = sbr.rel target = $region3
    $region8: #{tpu_custom_call.1} parent=1 // loop_exit
      _
    %560 = vsyncpa [#allocation5], 1
    %s561 = scalar_lea.sflag [#allocation5], 1
    %562 = vsyncpa %s561, 1
    %563 = vsyncpa [#allocation6], 1
    %s564 = scalar_lea.sflag [#allocation6], 1
    %565 = vsyncpa %s564, 1

</llo_original>
